<compile_context>
chip_gen: v6e
topology: v6e:2x2x1
jax: 0.10.0
libtpu: 0.0.40
codegen_flags: <defaults>
</compile_context>

<pallas_src>
import functools

import jax
import jax.numpy as jnp
from jax.experimental import pallas as pl
from jax.experimental.pallas import tpu as pltpu

LOG_STD_MIN = -20.0
LOG_STD_MAX = 2.0

LANE = 128      # TPU lane width (last dim)
SUBLANE = 16    # bf16 sublane packing (second-to-last dim)


def _round_up(x, m):
    return (x + m - 1) // m * m


def _mlp_kernel(state_ref,
                w1_ref, b1_ref,
                wmid_ref, bmid_ref,
                wh_ref, bh_ref,
                out_ref, *, action_dim):
    """Fused 4-layer ReLU MLP + fused (mean|log_std) head + clamp, all in VMEM.

    `state_ref` arrives at its real feature width (no lane padding in HBM); the
    bf16 cast happens here, so the input side only moves the true payload.
    """
    cdt = w1_ref.dtype  # compute dtype for MXU feeds (bf16)

    def dense_relu(x, w, b):
        # MXU matmul in bf16 with f32 accumulation; bias + ReLU in f32.
        y = jnp.dot(x, w, preferred_element_type=jnp.float32) + b
        return jnp.maximum(y, 0.0).astype(cdt)

    x = state_ref[...].astype(cdt)                 # [tile_b, S] bf16
    x = dense_relu(x, w1_ref[...], b1_ref[...])    # [tile_b, H_pad]
    for l in range(wmid_ref.shape[0]):             # layers 2..4, static unroll
        x = dense_relu(x, wmid_ref[l], bmid_ref[l])

    # Fused head: columns [0, A) = mean, [A, 2A) = log_std (clamped).
    y = jnp.dot(x, wh_ref[...], preferred_element_type=jnp.float32) + bh_ref[...]
    col = jax.lax.broadcasted_iota(jnp.int32, y.shape, dimension=1)
    out_ref[...] = jnp.where(
        col >= action_dim, jnp.clip(y, LOG_STD_MIN, LOG_STD_MAX), y
    ).astype(out_ref.dtype)


def state_action_net_forward(state, action, params, *,
                             compute_dtype=jnp.bfloat16, max_tile_b=1024):
    """Pallas wrapper. `action` is accepted but unused (matches reference forward)."""
    del action  # the PyTorch forward never touches `action`
    B, S = state.shape
    H = params["w1"].shape[1]
    A = params["wm"].shape[1]
    H_pad = _round_up(H, LANE)
    O = 2 * A  # fused head width: mean | log_std

    def pad2(a, rows, cols, dtype):
        a = a.astype(dtype)
        return jnp.pad(a, ((0, rows - a.shape[0]), (0, cols - a.shape[1])))

    # Weights/biases are tiny: pad hidden axis to a full 128-lane slab once.
    w1 = pad2(params["w1"], S, H_pad, compute_dtype)             # [S, H_pad]
    b1 = pad2(params["b1"], 1, H_pad, jnp.float32)               # [1, H_pad]
    w_mid = jnp.stack([pad2(params[f"w{i}"], H_pad, H_pad, compute_dtype)
                       for i in (2, 3, 4)])                      # [3, H_pad, H_pad]
    b_mid = jnp.stack([pad2(params[f"b{i}"], 1, H_pad, jnp.float32)
                       for i in (2, 3, 4)])                      # [3, 1, H_pad]
    wh = pad2(jnp.concatenate([params["wm"], params["ws"]], axis=1),
              H_pad, O, compute_dtype)                           # [H_pad, 2A]
    bh = jnp.concatenate([params["bm"], params["bs"]],
                         axis=1).astype(jnp.float32)             # [1, 2A]

    # Batch tiling: minimize padded rows and keep >= 2 tiles so v7x's second
    # TensorCore has work (harmless on single-TC v5e/v6e).
    B_ceil = _round_up(B, SUBLANE)
    min_tiles = 2 if B_ceil >= 2 * SUBLANE else 1
    n_tiles = max(pl.cdiv(B_ceil, max_tile_b), min_tiles)
    tile_b = _round_up(pl.cdiv(B_ceil, n_tiles), SUBLANE)
    grid = (pl.cdiv(B, tile_b),)   # edge tile is clamped by Pallas; no wrapper pad

    operands = (state, w1, b1, w_mid, b_mid, wh, bh)

    def resident(arr):
        # Full-array block with a constant block index -> stays VMEM-resident.
        return pl.BlockSpec(arr.shape, lambda *_, nd=arr.ndim: (0,) * nd)

    in_specs = (
        [pl.BlockSpec((tile_b, S), lambda i: (i, 0))]   # real-width batch tiles
        + [resident(a) for a in operands[1:]]           # resident weights/biases
    )
    out_specs = pl.BlockSpec((tile_b, O), lambda i: (i, 0))
    out_shape = jax.ShapeDtypeStruct((B, O), jnp.float32)  # narrow writeback (2A cols)

    out = pl.pallas_call(
        functools.partial(_mlp_kernel, action_dim=A),
        grid=grid,
        in_specs=in_specs,
        out_specs=out_specs,
        out_shape=out_shape,
        compiler_params=pltpu.CompilerParams(
            dimension_semantics=("parallel",),   # shard batch tiles on v7x's 2 TCs
        ),
    )(*operands)

    mean = out[:, :A]
    log_std = out[:, A:]
    return mean, log_std


def init_params(key, state_dim, hidden_dim, action_dim):
    """Deterministic synthetic parameter init (Kaiming-ish scaling)."""
    keys = jax.random.split(key, 12)

    def dense(kw, kb, fan_in, fan_out):
        scale = (2.0 / fan_in) ** 0.5
        w = jax.random.normal(kw, (fan_in, fan_out), jnp.float32) * scale
        b = jax.random.normal(kb, (1, fan_out), jnp.float32) * 0.01
        return w, b

    w1, b1 = dense(keys[0], keys[1], state_dim, hidden_dim)
    w2, b2 = dense(keys[2], keys[3], hidden_dim, hidden_dim)
    w3, b3 = dense(keys[4], keys[5], hidden_dim, hidden_dim)
    w4, b4 = dense(keys[6], keys[7], hidden_dim, hidden_dim)
    wm, bm = dense(keys[8], keys[9], hidden_dim, action_dim)
    ws, bs = dense(keys[10], keys[11], hidden_dim, action_dim)
    return dict(w1=w1, b1=b1, w2=w2, b2=b2, w3=w3, b3=b3, w4=w4, b4=b4,
                wm=wm, bm=bm, ws=ws, bs=bs)


def _reference_forward(state, params, compute_dtype=jnp.float32):
    """Pure-JAX reference. With compute_dtype=bf16 it mirrors the kernel's math."""
    x = state.astype(compute_dtype)
    for i in (1, 2, 3, 4):
        w = params[f"w{i}"].astype(compute_dtype)
        y = jnp.dot(x, w, preferred_element_type=jnp.float32) + params[f"b{i}"]
        x = jnp.maximum(y, 0.0).astype(compute_dtype)
    mean = jnp.dot(x, params["wm"].astype(compute_dtype),
                   preferred_element_type=jnp.float32) + params["bm"]
    log_std = jnp.dot(x, params["ws"].astype(compute_dtype),
                      preferred_element_type=jnp.float32) + params["bs"]
    log_std = jnp.clip(log_std, LOG_STD_MIN, LOG_STD_MAX)
    return mean, log_std


def _check(B, state_dim, hidden, action_dim, seed):
    key = jax.random.PRNGKey(seed)
    k_state, k_action, k_params = jax.random.split(key, 3)
    state = jax.random.normal(k_state, (B, state_dim), jnp.float32)
    action = jax.random.normal(k_action, (B, action_dim), jnp.float32)  # unused
    params = init_params(k_params, state_dim, hidden, action_dim)

    mean, log_std = state_action_net_forward(state, action, params)
    jax.block_until_ready((mean, log_std))

    # Exact-math check against a bf16-matched reference.
    ref_mean_bf16, ref_log_std_bf16 = _reference_forward(state, params, jnp.bfloat16)
    assert jnp.allclose(mean, ref_mean_bf16, atol=1e-3, rtol=1e-3)
    assert jnp.allclose(log_std, ref_log_std_bf16, atol=1e-3, rtol=1e-3)

    # Semantics check against the full-f32 reference (looser: bf16 quantization).
    ref_mean_f32, ref_log_std_f32 = _reference_forward(state, params, jnp.float32)
    assert jnp.allclose(mean, ref_mean_f32, atol=2e-1, rtol=5e-2)
    assert jnp.allclose(log_std, ref_log_std_f32, atol=2e-1, rtol=5e-2)

    assert mean.shape == (B, action_dim) and log_std.shape == (B, action_dim)
    assert float(jnp.max(log_std)) <= LOG_STD_MAX
    assert float(jnp.min(log_std)) >= LOG_STD_MIN
    assert bool(jnp.all(jnp.isfinite(mean))) and bool(jnp.all(jnp.isfinite(log_std)))
    return mean, log_std


if __name__ == "__main__":
    B, STATE_DIM, HIDDEN, ACTION_DIM = 2, 16, 32, 4

    # Primary small-shape run (single grid step, edge-clamped batch tile).
    _check(B, STATE_DIM, HIDDEN, ACTION_DIM, seed=0)
    # Exercise the multi-tile / "parallel" grid path with a ragged batch.
    _check(40, STATE_DIM, HIDDEN, ACTION_DIM, seed=0)

    print("KERNEL_OK")
</pallas_src>

<mosaic_0001>
module attributes {stable_mosaic.version = 11 : i64} {
  func.func @_mlp_kernel(%arg0: i32, %arg1: memref<16x16xf32, #tpu.memory_space<vmem>>, %arg2: memref<16x128xbf16, #tpu.memory_space<vmem>>, %arg3: memref<1x128xf32, #tpu.memory_space<vmem>>, %arg4: memref<3x128x128xbf16, #tpu.memory_space<vmem>>, %arg5: memref<3x1x128xf32, #tpu.memory_space<vmem>>, %arg6: memref<128x8xbf16, #tpu.memory_space<vmem>>, %arg7: memref<1x8xf32, #tpu.memory_space<vmem>>, %arg8: memref<16x8xf32, #tpu.memory_space<vmem>>) attributes {dimension_semantics = [#tpu.dimension_semantics<parallel>], iteration_bounds = array<i64: 1>, scalar_prefetch = 0 : i64, scratch_operands = 0 : i64, tpu.core_type = #tpu.core_type<tc>, window_params = [{transform_indices = @transform_0, window_bounds = array<i64: 16, 16>}, {pipeline_mode = #tpu.pipeline_mode<synchronous>, transform_indices = @transform_1, window_bounds = array<i64: 16, 128>}, {pipeline_mode = #tpu.pipeline_mode<synchronous>, transform_indices = @transform_2, window_bounds = array<i64: 1, 128>}, {pipeline_mode = #tpu.pipeline_mode<synchronous>, transform_indices = @transform_3, window_bounds = array<i64: 3, 128, 128>}, {pipeline_mode = #tpu.pipeline_mode<synchronous>, transform_indices = @transform_4, window_bounds = array<i64: 3, 1, 128>}, {pipeline_mode = #tpu.pipeline_mode<synchronous>, transform_indices = @transform_5, window_bounds = array<i64: 128, 8>}, {pipeline_mode = #tpu.pipeline_mode<synchronous>, transform_indices = @transform_6, window_bounds = array<i64: 1, 8>}, {transform_indices = @transform_7, window_bounds = array<i64: 16, 8>}]} {
    %c0 = arith.constant 0 : index
    %c0_0 = arith.constant 0 : index
    %0 = vector.load %arg1[%c0, %c0_0] : memref<16x16xf32, #tpu.memory_space<vmem>>, vector<16x16xf32>
    %1 = arith.truncf %0 : vector<16x16xf32> to vector<16x16xbf16>
    %c0_1 = arith.constant 0 : index
    %c0_2 = arith.constant 0 : index
    %2 = vector.load %arg2[%c0_1, %c0_2] : memref<16x128xbf16, #tpu.memory_space<vmem>>, vector<16x128xbf16>
    %c0_3 = arith.constant 0 : index
    %c0_4 = arith.constant 0 : index
    %3 = vector.load %arg3[%c0_3, %c0_4] : memref<1x128xf32, #tpu.memory_space<vmem>>, vector<1x128xf32>
    %cst = arith.constant dense<0.000000e+00> : vector<16x128xf32>
    %4 = tpu.matmul %1, %2, %cst {dimension_numbers = #tpu.dot_dimension_numbers<[1], [0], [0], [1], [0, 0, 1, 1], [], []>} : vector<16x16xbf16>, vector<16x128xbf16>, vector<16x128xf32> -> vector<16x128xf32>
    %5 = vector.broadcast %3 : vector<1x128xf32> to vector<16x128xf32>
    %6 = arith.addf %4, %5 : vector<16x128xf32>
    %cst_5 = arith.constant 0.000000e+00 : f32
    %7 = vector.broadcast %cst_5 : f32 to vector<16x128xf32>
    %8 = arith.maximumf %6, %7 : vector<16x128xf32>
    %9 = arith.truncf %8 : vector<16x128xf32> to vector<16x128xbf16>
    %c0_6 = arith.constant 0 : index
    %c0_7 = arith.constant 0 : index
    %c0_8 = arith.constant 0 : index
    %10 = vector.load %arg4[%c0_6, %c0_7, %c0_8] : memref<3x128x128xbf16, #tpu.memory_space<vmem>>, vector<1x128x128xbf16>
    %11 = vector.shape_cast %10 : vector<1x128x128xbf16> to vector<128x128xbf16>
    %c0_9 = arith.constant 0 : index
    %c0_10 = arith.constant 0 : index
    %c0_11 = arith.constant 0 : index
    %12 = vector.load %arg5[%c0_9, %c0_10, %c0_11] : memref<3x1x128xf32, #tpu.memory_space<vmem>>, vector<1x1x128xf32>
    %13 = vector.shape_cast %12 : vector<1x1x128xf32> to vector<1x128xf32>
    %cst_12 = arith.constant dense<0.000000e+00> : vector<16x128xf32>
    %14 = tpu.matmul %9, %11, %cst_12 {dimension_numbers = #tpu.dot_dimension_numbers<[1], [0], [0], [1], [0, 0, 1, 1], [], []>} : vector<16x128xbf16>, vector<128x128xbf16>, vector<16x128xf32> -> vector<16x128xf32>
    %15 = vector.broadcast %13 : vector<1x128xf32> to vector<16x128xf32>
    %16 = arith.addf %14, %15 : vector<16x128xf32>
    %cst_13 = arith.constant 0.000000e+00 : f32
    %17 = vector.broadcast %cst_13 : f32 to vector<16x128xf32>
    %18 = arith.maximumf %16, %17 : vector<16x128xf32>
    %19 = arith.truncf %18 : vector<16x128xf32> to vector<16x128xbf16>
    %c1 = arith.constant 1 : index
    %c0_14 = arith.constant 0 : index
    %c0_15 = arith.constant 0 : index
    %20 = vector.load %arg4[%c1, %c0_14, %c0_15] : memref<3x128x128xbf16, #tpu.memory_space<vmem>>, vector<1x128x128xbf16>
    %21 = vector.shape_cast %20 : vector<1x128x128xbf16> to vector<128x128xbf16>
    %c1_16 = arith.constant 1 : index
    %c0_17 = arith.constant 0 : index
    %c0_18 = arith.constant 0 : index
    %22 = vector.load %arg5[%c1_16, %c0_17, %c0_18] : memref<3x1x128xf32, #tpu.memory_space<vmem>>, vector<1x1x128xf32>
    %23 = vector.shape_cast %22 : vector<1x1x128xf32> to vector<1x128xf32>
    %cst_19 = arith.constant dense<0.000000e+00> : vector<16x128xf32>
    %24 = tpu.matmul %19, %21, %cst_19 {dimension_numbers = #tpu.dot_dimension_numbers<[1], [0], [0], [1], [0, 0, 1, 1], [], []>} : vector<16x128xbf16>, vector<128x128xbf16>, vector<16x128xf32> -> vector<16x128xf32>
    %25 = vector.broadcast %23 : vector<1x128xf32> to vector<16x128xf32>
    %26 = arith.addf %24, %25 : vector<16x128xf32>
    %cst_20 = arith.constant 0.000000e+00 : f32
    %27 = vector.broadcast %cst_20 : f32 to vector<16x128xf32>
    %28 = arith.maximumf %26, %27 : vector<16x128xf32>
    %29 = arith.truncf %28 : vector<16x128xf32> to vector<16x128xbf16>
    %c2 = arith.constant 2 : index
    %c0_21 = arith.constant 0 : index
    %c0_22 = arith.constant 0 : index
    %30 = vector.load %arg4[%c2, %c0_21, %c0_22] : memref<3x128x128xbf16, #tpu.memory_space<vmem>>, vector<1x128x128xbf16>
    %31 = vector.shape_cast %30 : vector<1x128x128xbf16> to vector<128x128xbf16>
    %c2_23 = arith.constant 2 : index
    %c0_24 = arith.constant 0 : index
    %c0_25 = arith.constant 0 : index
    %32 = vector.load %arg5[%c2_23, %c0_24, %c0_25] : memref<3x1x128xf32, #tpu.memory_space<vmem>>, vector<1x1x128xf32>
    %33 = vector.shape_cast %32 : vector<1x1x128xf32> to vector<1x128xf32>
    %cst_26 = arith.constant dense<0.000000e+00> : vector<16x128xf32>
    %34 = tpu.matmul %29, %31, %cst_26 {dimension_numbers = #tpu.dot_dimension_numbers<[1], [0], [0], [1], [0, 0, 1, 1], [], []>} : vector<16x128xbf16>, vector<128x128xbf16>, vector<16x128xf32> -> vector<16x128xf32>
    %35 = vector.broadcast %33 : vector<1x128xf32> to vector<16x128xf32>
    %36 = arith.addf %34, %35 : vector<16x128xf32>
    %cst_27 = arith.constant 0.000000e+00 : f32
    %37 = vector.broadcast %cst_27 : f32 to vector<16x128xf32>
    %38 = arith.maximumf %36, %37 : vector<16x128xf32>
    %39 = arith.truncf %38 : vector<16x128xf32> to vector<16x128xbf16>
    %c0_28 = arith.constant 0 : index
    %c0_29 = arith.constant 0 : index
    %40 = vector.load %arg6[%c0_28, %c0_29] : memref<128x8xbf16, #tpu.memory_space<vmem>>, vector<128x8xbf16>
    %cst_30 = arith.constant dense<0.000000e+00> : vector<16x8xf32>
    %41 = tpu.matmul %39, %40, %cst_30 {dimension_numbers = #tpu.dot_dimension_numbers<[1], [0], [0], [1], [0, 0, 1, 1], [], []>} : vector<16x128xbf16>, vector<128x8xbf16>, vector<16x8xf32> -> vector<16x8xf32>
    %c0_31 = arith.constant 0 : index
    %c0_32 = arith.constant 0 : index
    %42 = vector.load %arg7[%c0_31, %c0_32] : memref<1x8xf32, #tpu.memory_space<vmem>>, vector<1x8xf32>
    %43 = vector.broadcast %42 : vector<1x8xf32> to vector<16x8xf32>
    %44 = arith.addf %41, %43 : vector<16x8xf32>
    %45 = tpu.iota {dimensions = array<i32: 1>} : vector<16x8xi32>
    %c4_i32 = arith.constant 4 : i32
    %46 = vector.broadcast %c4_i32 : i32 to vector<16x8xi32>
    %47 = arith.cmpi sge, %45, %46 : vector<16x8xi32>
    %cst_33 = arith.constant -2.000000e+01 : f32
    %cst_34 = arith.constant 2.000000e+00 : f32
    %48 = vector.broadcast %cst_33 : f32 to vector<16x8xf32>
    %49 = arith.maximumf %48, %44 : vector<16x8xf32>
    %50 = vector.broadcast %cst_34 : f32 to vector<16x8xf32>
    %51 = arith.minimumf %50, %49 : vector<16x8xf32>
    %52 = arith.select %47, %51, %44 : vector<16x8xi1>, vector<16x8xf32>
    %c0_35 = arith.constant 0 : index
    %c0_36 = arith.constant 0 : index
    %53 = vector.load %arg8[%c0_35, %c0_36] : memref<16x8xf32, #tpu.memory_space<vmem>>, vector<16x8xf32>
    tpu.vector_store %arg8[%c0_35, %c0_36], %52 {strides = array<i32>} : memref<16x8xf32, #tpu.memory_space<vmem>>, vector<16x8xf32>,
    return
  }
  func.func @transform_0(%arg0: i32) -> (i32, i32) {
    %c0_i32 = arith.constant 0 : i32
    %c0_i32_0 = arith.constant 0 : i32
    return %arg0, %c0_i32 : i32, i32
  }
  func.func @transform_1(%arg0: i32) -> (i32, i32) {
    %c0_i32 = arith.constant 0 : i32
    %c0_i32_0 = arith.constant 0 : i32
    %c0_i32_1 = arith.constant 0 : i32
    return %c0_i32, %c0_i32_0 : i32, i32
  }
  func.func @transform_2(%arg0: i32) -> (i32, i32) {
    %c0_i32 = arith.constant 0 : i32
    %c0_i32_0 = arith.constant 0 : i32
    %c0_i32_1 = arith.constant 0 : i32
    return %c0_i32, %c0_i32_0 : i32, i32
  }
  func.func @transform_3(%arg0: i32) -> (i32, i32, i32) {
    %c0_i32 = arith.constant 0 : i32
    %c0_i32_0 = arith.constant 0 : i32
    %c0_i32_1 = arith.constant 0 : i32
    %c0_i32_2 = arith.constant 0 : i32
    return %c0_i32, %c0_i32_0, %c0_i32_1 : i32, i32, i32
  }
  func.func @transform_4(%arg0: i32) -> (i32, i32, i32) {
    %c0_i32 = arith.constant 0 : i32
    %c0_i32_0 = arith.constant 0 : i32
    %c0_i32_1 = arith.constant 0 : i32
    %c0_i32_2 = arith.constant 0 : i32
    return %c0_i32, %c0_i32_0, %c0_i32_1 : i32, i32, i32
  }
  func.func @transform_5(%arg0: i32) -> (i32, i32) {
    %c0_i32 = arith.constant 0 : i32
    %c0_i32_0 = arith.constant 0 : i32
    %c0_i32_1 = arith.constant 0 : i32
    return %c0_i32, %c0_i32_0 : i32, i32
  }
  func.func @transform_6(%arg0: i32) -> (i32, i32) {
    %c0_i32 = arith.constant 0 : i32
    %c0_i32_0 = arith.constant 0 : i32
    %c0_i32_1 = arith.constant 0 : i32
    return %c0_i32, %c0_i32_0 : i32, i32
  }
  func.func @transform_7(%arg0: i32) -> (i32, i32) {
    %c0_i32 = arith.constant 0 : i32
    %c0_i32_0 = arith.constant 0 : i32
    return %arg0, %c0_i32 : i32, i32
  }
}

</mosaic_0001>

<llo_original>
// kernel: tpu_custom_call.1
$region0: #{tpu_custom_call.1}
  #allocation0 [shape = 'u32[]', space=smem, size = 0x4, offset = 0x4, fixed_abs, tag = 'smem constant byte address 0x4 - core index']
  #allocation1 [shape = 'u32[144,128]{1,0:T(1,128)}', space=vmem, size = 0x12000, scoped, tag = 'internal scratch']
  %s0 = inlined_call_operand.vmem [shape: f32[2,16], index: 0, kind: input, shape index: {}]
  %s1 = inlined_call_operand.vmem [shape: bf16[16,128], index: 1, kind: input, shape index: {}]
  %s2 = inlined_call_operand.vmem [shape: f32[1,128], index: 2, kind: input, shape index: {}]
  %s3 = inlined_call_operand.hbm [shape: bf16[3,128,128], index: 3, kind: input, shape index: {}]
  %s4 = inlined_call_operand.vmem [shape: f32[3,1,128], index: 4, kind: input, shape index: {}]
  %s5 = inlined_call_operand.vmem [shape: bf16[128,8], index: 5, kind: input, shape index: {}]
  %s6 = inlined_call_operand.vmem [shape: f32[1,8], index: 6, kind: input, shape index: {}]
  %s7 = inlined_call_operand.hbm [shape: f32[2,8], index: 7, kind: output, shape index: {}]
  %s8 = sld [smem:[#allocation0]]
  $region42: #{tpu_custom_call.1} parent=0
    _
  %s10 = ssub.s32 1, %s8
  %s11 = scalar_select 0, %s10, %s8
  $region1: #{tpu_custom_call.1} parent=0
    #allocation2 [shape = 'u8[98304]{0}', space=vmem, size = 0x18000, scoped, tag = 'input window, operand 3, single buffered']
    #allocation3 [shape = 's32[1]{0}', space=sflag, size = 0x4, scoped, tag = 'scoped memory for tpu_custom_call.1']
    #allocation4 [shape = 's32[1]{0}', space=sflag, size = 0x4, scoped, tag = 'scoped memory for tpu_custom_call.1']
    #allocation5 [shape = 'u8[8192]{0}', space=vmem, size = 0x2000, scoped, tag = 'output window, operand 0, single buffered']
    %12 = vsyncpa [#allocation3], 0
    %13 = vsyncpa [#allocation4], 0
    // Predicated region
    $region2: #{tpu_custom_call.1} parent=1 // pred_check
      _
    $region3: #{tpu_custom_call.1} parent=1 // pred_check_branch
      %15 = sbr.rel (0) target = $region5
    $region4: #{tpu_custom_call.1} parent=1 // pred_region
      _
    $region5: #{tpu_custom_call.1} parent=1 // pred_fallthru
      _
    // Predicated region
    $region6: #{tpu_custom_call.1} parent=1 // pred_check
      _
    $region7: #{tpu_custom_call.1} parent=1 // pred_check_branch
      %17 = sbr.rel (0) target = $region9
    $region8: #{tpu_custom_call.1} parent=1 // pred_region
      _
    $region9: #{tpu_custom_call.1} parent=1 // pred_fallthru
      _
    // Predicated region
    $region10: #{tpu_custom_call.1} parent=1 // pred_check
      _
    $region11: #{tpu_custom_call.1} parent=1 // pred_check_branch
      %19 = sbr.rel (0) target = $region13
    $region12: #{tpu_custom_call.1} parent=1 // pred_region
      _
    $region13: #{tpu_custom_call.1} parent=1 // pred_fallthru
      _
    // Predicated region
    $region14: #{tpu_custom_call.1} parent=1 // pred_check
      _
    $region15: #{tpu_custom_call.1} parent=1 // pred_check_branch
      %21 = sbr.rel (0) target = $region17
    $region16: #{tpu_custom_call.1} parent=1 // pred_region
      %s23 = ssub.s32 3072, 3072
      %24 = vsyncadd [#allocation3], %s23
      %s25 = sshll.u32 [#allocation2], 4
      %s26 = int_to_ptr.vmem [resolvable:$true] %s25
      %31 = dma.hbm_to_vmem [thread:$0]  %s3, 3072, %s26, [#allocation3], 64, 64, 4
    $region17: #{tpu_custom_call.1} parent=1 // pred_fallthru
      _
    // Predicated region
    $region18: #{tpu_custom_call.1} parent=1 // pred_check
      _
    $region19: #{tpu_custom_call.1} parent=1 // pred_check_branch
      %33 = sbr.rel (0) target = $region21
    $region20: #{tpu_custom_call.1} parent=1 // pred_region
      _
    $region21: #{tpu_custom_call.1} parent=1 // pred_fallthru
      _
    // Predicated region
    $region22: #{tpu_custom_call.1} parent=1 // pred_check
      _
    $region23: #{tpu_custom_call.1} parent=1 // pred_check_branch
      %35 = sbr.rel (0) target = $region25
    $region24: #{tpu_custom_call.1} parent=1 // pred_region
      _
    $region25: #{tpu_custom_call.1} parent=1 // pred_fallthru
      _
    // Predicated region
    $region26: #{tpu_custom_call.1} parent=1 // pred_check
      _
    $region27: #{tpu_custom_call.1} parent=1 // pred_check_branch
      %37 = sbr.rel (0) target = $region29
    $region28: #{tpu_custom_call.1} parent=1 // pred_region
      _
    $region29: #{tpu_custom_call.1} parent=1 // pred_fallthru
      _
    // Predicated region
    $region30: #{tpu_custom_call.1} parent=1 // pred_check
      _
    $region31: #{tpu_custom_call.1} parent=1 // pred_check_branch
      %39 = sbr.rel (0) target = $region33
    $region32: #{tpu_custom_call.1} parent=1 // pred_region
      %40 = dma.done [#allocation3], 3072
    $region33: #{tpu_custom_call.1} parent=1 // pred_fallthru
      _
    %v42 = vld [vmem:[%s0] sm:$0xff]
    %v43 = vld [vmem:[%s0 + $0x8] sm:$0xff]
    %v44 = vpack.c.bf16 %v43, %v42
    %v45 = vld [vmem:[%s1] sm:$0xf]
    %v46 = vld [vmem:[%s1 + $0x4] sm:$0xf]
    %v47 = vld [vmem:[%s2] sm:$0x1]
    %v49 = vlaneseq
    %v50 = vshrl.u32 %v49, 7
    %v51 = vsub.s32 0, %v50
    %v52 = vrot.slane %v47, %v51
    %v56 = vunpack.c.l.b16 %v45
    %v57 = vunpack.c.l.b16 %v46
    %v58 = vpack.c.b16 %v57, %v56
    %vm60 = vcmask 130048
    %v62 = vsel %vm60, %v44, 0
    %64 = vmatprep.subr.bf16.mxu0 0
    %65 = vmatpush1.bf16.msra.mxu0 0
    %66 = vmatprep.subr.bf16.mxu0 0
    %67 = vmatpush1.bf16.msra.mxu0 0
    %68 = vmatprep.subr.bf16.mxu0 0
    %69 = vmatpush1.bf16.msra.mxu0 0
    %70 = vmatprep.subr.bf16.mxu0 0
    %71 = vmatpush1.bf16.msra.mxu0 0
    %72 = vmatprep.subr.bf16.mxu0 0
    %73 = vmatpush1.bf16.msra.mxu0 0
    %74 = vmatprep.subr.bf16.mxu0 0
    %75 = vmatpush1.bf16.msra.mxu0 0
    %76 = vmatprep.subr.bf16.mxu0 0
    %77 = vmatpush1.bf16.msra.mxu0 0
    %78 = vmatprep.subr.bf16.mxu0 0
    %79 = vmatpush1.bf16.msra.mxu0 %v58
    %80 = vmatprep.subr.bf16.mxu0 0
    %81 = vmatpush2.bf16.msra.mxu0 0
    %82 = vmatprep.subr.bf16.mxu0 0
    %83 = vmatpush2.bf16.msra.mxu0 0
    %84 = vmatprep.subr.bf16.mxu0 0
    %85 = vmatpush2.bf16.msra.mxu0 0
    %86 = vmatprep.subr.bf16.mxu0 0
    %87 = vmatpush2.bf16.msra.mxu0 0
    %88 = vmatprep.subr.bf16.mxu0 0
    %89 = vmatpush2.bf16.msra.mxu0 0
    %90 = vmatprep.subr.bf16.mxu0 0
    %91 = vmatpush2.bf16.msra.mxu0 0
    %92 = vmatprep.subr.bf16.mxu0 0
    %93 = vmatpush2.bf16.msra.mxu0 0
    %94 = vmatprep.subr.bf16.mxu0 0
    %95 = vmatpush2.bf16.msra.mxu0 0
    %96 = vmatprep.mubr.bf16.mxu0 0
    %97 = vmatmul.mubr.bf16.gmra.mxu0 %v62
    %v98 = vpop.f32.mrf.mxu0
    %v99 = vadd.f32 %v52, %v98
    %v100 = vpop.f32.mrf.mxu0
    %v101 = vpop.f32.mrf.mxu0
    %v102 = vadd.f32 %v52, %v101
    %v103 = vpop.f32.mrf.mxu0
    %104 = vdwg.mxu0
    %v105 = vmax.f32 %v99, 0.0
    %v106 = vmax.f32 %v102, 0.0
    %v107 = vpack.c.bf16 %v106, %v105
    %v108 = vld [vmem:[#allocation2] sm:$0xf]
    %v109 = vld [vmem:[#allocation2 + $0x4] sm:$0xf]
    %v110 = vld [vmem:[#allocation2 + $0x8] sm:$0xf]
    %v111 = vld [vmem:[#allocation2 + $0xc] sm:$0xf]
    %v112 = vld [vmem:[#allocation2 + $0x10] sm:$0xf]
    %v113 = vld [vmem:[#allocation2 + $0x14] sm:$0xf]
    %v114 = vld [vmem:[#allocation2 + $0x18] sm:$0xf]
    %v115 = vld [vmem:[#allocation2 + $0x1c] sm:$0xf]
    %v116 = vld [vmem:[#allocation2 + $0x20] sm:$0xf]
    %v117 = vld [vmem:[#allocation2 + $0x24] sm:$0xf]
    %v118 = vld [vmem:[#allocation2 + $0x28] sm:$0xf]
    %v119 = vld [vmem:[#allocation2 + $0x2c] sm:$0xf]
    %v120 = vld [vmem:[#allocation2 + $0x30] sm:$0xf]
    %v121 = vld [vmem:[#allocation2 + $0x34] sm:$0xf]
    %v122 = vld [vmem:[#allocation2 + $0x38] sm:$0xf]
    %v123 = vld [vmem:[#allocation2 + $0x3c] sm:$0xf]
    %v124 = vld [vmem:[%s4] sm:$0x1]
    %v126 = vlaneseq
    %v127 = vshrl.u32 %v126, 7
    %v128 = vsub.s32 0, %v127
    %v129 = vrot.slane %v124, %v128
    %v147 = vunpack.c.l.b16 %v108
    %v148 = vunpack.c.l.b16 %v109
    %v149 = vunpack.c.l.b16 %v110
    %v150 = vunpack.c.l.b16 %v111
    %v151 = vunpack.c.l.b16 %v112
    %v152 = vunpack.c.l.b16 %v113
    %v153 = vunpack.c.l.b16 %v114
    %v154 = vunpack.c.l.b16 %v115
    %v155 = vunpack.c.l.b16 %v116
    %v156 = vunpack.c.l.b16 %v117
    %v157 = vunpack.c.l.b16 %v118
    %v158 = vunpack.c.l.b16 %v119
    %v159 = vunpack.c.l.b16 %v120
    %v160 = vunpack.c.l.b16 %v121
    %v161 = vunpack.c.l.b16 %v122
    %v162 = vunpack.c.l.b16 %v123
    %v163 = vpack.c.b16 %v148, %v147
    %v164 = vpack.c.b16 %v150, %v149
    %v165 = vpack.c.b16 %v152, %v151
    %v166 = vpack.c.b16 %v154, %v153
    %v167 = vpack.c.b16 %v156, %v155
    %v168 = vpack.c.b16 %v158, %v157
    %v169 = vpack.c.b16 %v160, %v159
    %v170 = vpack.c.b16 %v162, %v161
    %179 = vmatprep.subr.bf16.mxu0 0
    %180 = vmatpush1.bf16.msra.mxu0 %v170
    %181 = vmatprep.subr.bf16.mxu0 0
    %182 = vmatpush1.bf16.msra.mxu0 %v169
    %183 = vmatprep.subr.bf16.mxu0 0
    %184 = vmatpush1.bf16.msra.mxu0 %v168
    %185 = vmatprep.subr.bf16.mxu0 0
    %186 = vmatpush1.bf16.msra.mxu0 %v167
    %187 = vmatprep.subr.bf16.mxu0 0
    %188 = vmatpush1.bf16.msra.mxu0 %v166
    %189 = vmatprep.subr.bf16.mxu0 0
    %190 = vmatpush1.bf16.msra.mxu0 %v165
    %191 = vmatprep.subr.bf16.mxu0 0
    %192 = vmatpush1.bf16.msra.mxu0 %v164
    %193 = vmatprep.subr.bf16.mxu0 0
    %194 = vmatpush1.bf16.msra.mxu0 %v163
    %195 = vmatprep.subr.bf16.mxu0 0
    %196 = vmatpush2.bf16.msra.mxu0 0
    %197 = vmatprep.subr.bf16.mxu0 0
    %198 = vmatpush2.bf16.msra.mxu0 0
    %199 = vmatprep.subr.bf16.mxu0 0
    %200 = vmatpush2.bf16.msra.mxu0 0
    %201 = vmatprep.subr.bf16.mxu0 0
    %202 = vmatpush2.bf16.msra.mxu0 0
    %203 = vmatprep.subr.bf16.mxu0 0
    %204 = vmatpush2.bf16.msra.mxu0 0
    %205 = vmatprep.subr.bf16.mxu0 0
    %206 = vmatpush2.bf16.msra.mxu0 0
    %207 = vmatprep.subr.bf16.mxu0 0
    %208 = vmatpush2.bf16.msra.mxu0 0
    %209 = vmatprep.subr.bf16.mxu0 0
    %210 = vmatpush2.bf16.msra.mxu0 0
    %211 = vmatprep.mubr.bf16.mxu0 0
    %212 = vmatmul.mubr.bf16.gmra.mxu0 %v107
    %v213 = vpop.f32.mrf.mxu0
    %v214 = vadd.f32 %v129, %v213
    %v215 = vpop.f32.mrf.mxu0
    %v216 = vpop.f32.mrf.mxu0
    %v217 = vadd.f32 %v129, %v216
    %v218 = vpop.f32.mrf.mxu0
    %219 = vdwg.mxu0
    %v220 = vmax.f32 %v214, 0.0
    %v221 = vmax.f32 %v217, 0.0
    %v222 = vpack.c.bf16 %v221, %v220
    %s223 = scalar_lea.vmem [#allocation2], 64
    %v224 = vld [vmem:[%s223] sm:$0xf]
    %v225 = vld [vmem:[%s223 + $0x4] sm:$0xf]
    %v226 = vld [vmem:[%s223 + $0x8] sm:$0xf]
    %v227 = vld [vmem:[%s223 + $0xc] sm:$0xf]
    %v228 = vld [vmem:[%s223 + $0x10] sm:$0xf]
    %v229 = vld [vmem:[%s223 + $0x14] sm:$0xf]
    %v230 = vld [vmem:[%s223 + $0x18] sm:$0xf]
    %v231 = vld [vmem:[%s223 + $0x1c] sm:$0xf]
    %v232 = vld [vmem:[%s223 + $0x20] sm:$0xf]
    %v233 = vld [vmem:[%s223 + $0x24] sm:$0xf]
    %v234 = vld [vmem:[%s223 + $0x28] sm:$0xf]
    %v235 = vld [vmem:[%s223 + $0x2c] sm:$0xf]
    %v236 = vld [vmem:[%s223 + $0x30] sm:$0xf]
    %v237 = vld [vmem:[%s223 + $0x34] sm:$0xf]
    %v238 = vld [vmem:[%s223 + $0x38] sm:$0xf]
    %v239 = vld [vmem:[%s223 + $0x3c] sm:$0xf]
    %s240 = scalar_lea.vmem %s4, 1
    %v241 = vld [vmem:[%s240] sm:$0x1]
    %v243 = vlaneseq
    %v244 = vshrl.u32 %v243, 7
    %v245 = vsub.s32 0, %v244
    %v246 = vrot.slane %v241, %v245
    %v264 = vunpack.c.l.b16 %v224
    %v265 = vunpack.c.l.b16 %v225
    %v266 = vunpack.c.l.b16 %v226
    %v267 = vunpack.c.l.b16 %v227
    %v268 = vunpack.c.l.b16 %v228
    %v269 = vunpack.c.l.b16 %v229
    %v270 = vunpack.c.l.b16 %v230
    %v271 = vunpack.c.l.b16 %v231
    %v272 = vunpack.c.l.b16 %v232
    %v273 = vunpack.c.l.b16 %v233
    %v274 = vunpack.c.l.b16 %v234
    %v275 = vunpack.c.l.b16 %v235
    %v276 = vunpack.c.l.b16 %v236
    %v277 = vunpack.c.l.b16 %v237
    %v278 = vunpack.c.l.b16 %v238
    %v279 = vunpack.c.l.b16 %v239
    %v280 = vpack.c.b16 %v265, %v264
    %v281 = vpack.c.b16 %v267, %v266
    %v282 = vpack.c.b16 %v269, %v268
    %v283 = vpack.c.b16 %v271, %v270
    %v284 = vpack.c.b16 %v273, %v272
    %v285 = vpack.c.b16 %v275, %v274
    %v286 = vpack.c.b16 %v277, %v276
    %v287 = vpack.c.b16 %v279, %v278
    %296 = vmatprep.subr.bf16.mxu0 0
    %297 = vmatpush1.bf16.msra.mxu0 %v287
    %298 = vmatprep.subr.bf16.mxu0 0
    %299 = vmatpush1.bf16.msra.mxu0 %v286
    %300 = vmatprep.subr.bf16.mxu0 0
    %301 = vmatpush1.bf16.msra.mxu0 %v285
    %302 = vmatprep.subr.bf16.mxu0 0
    %303 = vmatpush1.bf16.msra.mxu0 %v284
    %304 = vmatprep.subr.bf16.mxu0 0
    %305 = vmatpush1.bf16.msra.mxu0 %v283
    %306 = vmatprep.subr.bf16.mxu0 0
    %307 = vmatpush1.bf16.msra.mxu0 %v282
    %308 = vmatprep.subr.bf16.mxu0 0
    %309 = vmatpush1.bf16.msra.mxu0 %v281
    %310 = vmatprep.subr.bf16.mxu0 0
    %311 = vmatpush1.bf16.msra.mxu0 %v280
    %312 = vmatprep.subr.bf16.mxu0 0
    %313 = vmatpush2.bf16.msra.mxu0 0
    %314 = vmatprep.subr.bf16.mxu0 0
    %315 = vmatpush2.bf16.msra.mxu0 0
    %316 = vmatprep.subr.bf16.mxu0 0
    %317 = vmatpush2.bf16.msra.mxu0 0
    %318 = vmatprep.subr.bf16.mxu0 0
    %319 = vmatpush2.bf16.msra.mxu0 0
    %320 = vmatprep.subr.bf16.mxu0 0
    %321 = vmatpush2.bf16.msra.mxu0 0
    %322 = vmatprep.subr.bf16.mxu0 0
    %323 = vmatpush2.bf16.msra.mxu0 0
    %324 = vmatprep.subr.bf16.mxu0 0
    %325 = vmatpush2.bf16.msra.mxu0 0
    %326 = vmatprep.subr.bf16.mxu0 0
    %327 = vmatpush2.bf16.msra.mxu0 0
    %328 = vmatprep.mubr.bf16.mxu0 0
    %329 = vmatmul.mubr.bf16.gmra.mxu0 %v222
    %v330 = vpop.f32.mrf.mxu0
    %v331 = vadd.f32 %v246, %v330
    %v332 = vpop.f32.mrf.mxu0
    %v333 = vpop.f32.mrf.mxu0
    %v334 = vadd.f32 %v246, %v333
    %v335 = vpop.f32.mrf.mxu0
    %336 = vdwg.mxu0
    %v337 = vmax.f32 %v331, 0.0
    %v338 = vmax.f32 %v334, 0.0
    %v339 = vpack.c.bf16 %v338, %v337
    %s340 = scalar_lea.vmem [#allocation2], 128
    %v341 = vld [vmem:[%s340] sm:$0xf]
    %v342 = vld [vmem:[%s340 + $0x4] sm:$0xf]
    %v343 = vld [vmem:[%s340 + $0x8] sm:$0xf]
    %v344 = vld [vmem:[%s340 + $0xc] sm:$0xf]
    %v345 = vld [vmem:[%s340 + $0x10] sm:$0xf]
    %v346 = vld [vmem:[%s340 + $0x14] sm:$0xf]
    %v347 = vld [vmem:[%s340 + $0x18] sm:$0xf]
    %v348 = vld [vmem:[%s340 + $0x1c] sm:$0xf]
    %v349 = vld [vmem:[%s340 + $0x20] sm:$0xf]
    %v350 = vld [vmem:[%s340 + $0x24] sm:$0xf]
    %v351 = vld [vmem:[%s340 + $0x28] sm:$0xf]
    %v352 = vld [vmem:[%s340 + $0x2c] sm:$0xf]
    %v353 = vld [vmem:[%s340 + $0x30] sm:$0xf]
    %v354 = vld [vmem:[%s340 + $0x34] sm:$0xf]
    %v355 = vld [vmem:[%s340 + $0x38] sm:$0xf]
    %v356 = vld [vmem:[%s340 + $0x3c] sm:$0xf]
    %s357 = scalar_lea.vmem %s4, 2
    %v358 = vld [vmem:[%s357] sm:$0x1]
    %v360 = vlaneseq
    %v361 = vshrl.u32 %v360, 7
    %v362 = vsub.s32 0, %v361
    %v363 = vrot.slane %v358, %v362
    %v381 = vunpack.c.l.b16 %v341
    %v382 = vunpack.c.l.b16 %v342
    %v383 = vunpack.c.l.b16 %v343
    %v384 = vunpack.c.l.b16 %v344
    %v385 = vunpack.c.l.b16 %v345
    %v386 = vunpack.c.l.b16 %v346
    %v387 = vunpack.c.l.b16 %v347
    %v388 = vunpack.c.l.b16 %v348
    %v389 = vunpack.c.l.b16 %v349
    %v390 = vunpack.c.l.b16 %v350
    %v391 = vunpack.c.l.b16 %v351
    %v392 = vunpack.c.l.b16 %v352
    %v393 = vunpack.c.l.b16 %v353
    %v394 = vunpack.c.l.b16 %v354
    %v395 = vunpack.c.l.b16 %v355
    %v396 = vunpack.c.l.b16 %v356
    %v397 = vpack.c.b16 %v382, %v381
    %v398 = vpack.c.b16 %v384, %v383
    %v399 = vpack.c.b16 %v386, %v385
    %v400 = vpack.c.b16 %v388, %v387
    %v401 = vpack.c.b16 %v390, %v389
    %v402 = vpack.c.b16 %v392, %v391
    %v403 = vpack.c.b16 %v394, %v393
    %v404 = vpack.c.b16 %v396, %v395
    %413 = vmatprep.subr.bf16.mxu0 0
    %414 = vmatpush1.bf16.msra.mxu0 %v404
    %415 = vmatprep.subr.bf16.mxu0 0
    %416 = vmatpush1.bf16.msra.mxu0 %v403
    %417 = vmatprep.subr.bf16.mxu0 0
    %418 = vmatpush1.bf16.msra.mxu0 %v402
    %419 = vmatprep.subr.bf16.mxu0 0
    %420 = vmatpush1.bf16.msra.mxu0 %v401
    %421 = vmatprep.subr.bf16.mxu0 0
    %422 = vmatpush1.bf16.msra.mxu0 %v400
    %423 = vmatprep.subr.bf16.mxu0 0
    %424 = vmatpush1.bf16.msra.mxu0 %v399
    %425 = vmatprep.subr.bf16.mxu0 0
    %426 = vmatpush1.bf16.msra.mxu0 %v398
    %427 = vmatprep.subr.bf16.mxu0 0
    %428 = vmatpush1.bf16.msra.mxu0 %v397
    %429 = vmatprep.subr.bf16.mxu0 0
    %430 = vmatpush2.bf16.msra.mxu0 0
    %431 = vmatprep.subr.bf16.mxu0 0
    %432 = vmatpush2.bf16.msra.mxu0 0
    %433 = vmatprep.subr.bf16.mxu0 0
    %434 = vmatpush2.bf16.msra.mxu0 0
    %435 = vmatprep.subr.bf16.mxu0 0
    %436 = vmatpush2.bf16.msra.mxu0 0
    %437 = vmatprep.subr.bf16.mxu0 0
    %438 = vmatpush2.bf16.msra.mxu0 0
    %439 = vmatprep.subr.bf16.mxu0 0
    %440 = vmatpush2.bf16.msra.mxu0 0
    %441 = vmatprep.subr.bf16.mxu0 0
    %442 = vmatpush2.bf16.msra.mxu0 0
    %443 = vmatprep.subr.bf16.mxu0 0
    %444 = vmatpush2.bf16.msra.mxu0 0
    %445 = vmatprep.mubr.bf16.mxu0 0
    %446 = vmatmul.mubr.bf16.gmra.mxu0 %v339
    %v447 = vpop.f32.mrf.mxu0
    %v448 = vadd.f32 %v363, %v447
    %v449 = vpop.f32.mrf.mxu0
    %v450 = vpop.f32.mrf.mxu0
    %v451 = vadd.f32 %v363, %v450
    %v452 = vpop.f32.mrf.mxu0
    %453 = vdwg.mxu0
    %v454 = vmax.f32 %v448, 0.0
    %v455 = vmax.f32 %v451, 0.0
    %v456 = vpack.c.bf16 %v455, %v454
    %v457 = vld [vmem:[%s5] sm:$0xf]
    %v458 = vld [vmem:[%s5 + $0x4] sm:$0xf]
    %v459 = vld [vmem:[%s5 + $0x8] sm:$0xf]
    %v460 = vld [vmem:[%s5 + $0xc] sm:$0xf]
    %v461 = vld [vmem:[%s5 + $0x10] sm:$0xf]
    %v462 = vld [vmem:[%s5 + $0x14] sm:$0xf]
    %v463 = vld [vmem:[%s5 + $0x18] sm:$0xf]
    %v464 = vld [vmem:[%s5 + $0x1c] sm:$0xf]
    %v465 = vld [vmem:[%s5 + $0x20] sm:$0xf]
    %v466 = vld [vmem:[%s5 + $0x24] sm:$0xf]
    %v467 = vld [vmem:[%s5 + $0x28] sm:$0xf]
    %v468 = vld [vmem:[%s5 + $0x2c] sm:$0xf]
    %v469 = vld [vmem:[%s5 + $0x30] sm:$0xf]
    %v470 = vld [vmem:[%s5 + $0x34] sm:$0xf]
    %v471 = vld [vmem:[%s5 + $0x38] sm:$0xf]
    %v472 = vld [vmem:[%s5 + $0x3c] sm:$0xf]
    %v473 = vld [vmem:[%s6] sm:$0x1]
    %v475 = vlaneseq
    %v476 = vshrl.u32 %v475, 7
    %v477 = vsub.s32 0, %v476
    %v478 = vrot.slane %v473, %v477
    %v496 = vunpack.c.l.b16 %v457
    %v497 = vunpack.c.l.b16 %v458
    %v498 = vunpack.c.l.b16 %v459
    %v499 = vunpack.c.l.b16 %v460
    %v500 = vunpack.c.l.b16 %v461
    %v501 = vunpack.c.l.b16 %v462
    %v502 = vunpack.c.l.b16 %v463
    %v503 = vunpack.c.l.b16 %v464
    %v504 = vunpack.c.l.b16 %v465
    %v505 = vunpack.c.l.b16 %v466
    %v506 = vunpack.c.l.b16 %v467
    %v507 = vunpack.c.l.b16 %v468
    %v508 = vunpack.c.l.b16 %v469
    %v509 = vunpack.c.l.b16 %v470
    %v510 = vunpack.c.l.b16 %v471
    %v511 = vunpack.c.l.b16 %v472
    %v512 = vpack.c.b16 %v497, %v496
    %v513 = vpack.c.b16 %v499, %v498
    %v514 = vpack.c.b16 %v501, %v500
    %v515 = vpack.c.b16 %v503, %v502
    %v516 = vpack.c.b16 %v505, %v504
    %v517 = vpack.c.b16 %v507, %v506
    %v518 = vpack.c.b16 %v509, %v508
    %v519 = vpack.c.b16 %v511, %v510
    %528 = vmatprep.subr.bf16.mxu0 0
    %529 = vmatpush1.bf16.msra.mxu0 %v519
    %530 = vmatprep.subr.bf16.mxu0 0
    %531 = vmatpush1.bf16.msra.mxu0 %v518
    %532 = vmatprep.subr.bf16.mxu0 0
    %533 = vmatpush1.bf16.msra.mxu0 %v517
    %534 = vmatprep.subr.bf16.mxu0 0
    %535 = vmatpush1.bf16.msra.mxu0 %v516
    %536 = vmatprep.subr.bf16.mxu0 0
    %537 = vmatpush1.bf16.msra.mxu0 %v515
    %538 = vmatprep.subr.bf16.mxu0 0
    %539 = vmatpush1.bf16.msra.mxu0 %v514
    %540 = vmatprep.subr.bf16.mxu0 0
    %541 = vmatpush1.bf16.msra.mxu0 %v513
    %542 = vmatprep.subr.bf16.mxu0 0
    %543 = vmatpush1.bf16.msra.mxu0 %v512
    %544 = vmatprep.subr.bf16.mxu0 0
    %545 = vmatpush2.bf16.msra.mxu0 0
    %546 = vmatprep.subr.bf16.mxu0 0
    %547 = vmatpush2.bf16.msra.mxu0 0
    %548 = vmatprep.subr.bf16.mxu0 0
    %549 = vmatpush2.bf16.msra.mxu0 0
    %550 = vmatprep.subr.bf16.mxu0 0
    %551 = vmatpush2.bf16.msra.mxu0 0
    %552 = vmatprep.subr.bf16.mxu0 0
    %553 = vmatpush2.bf16.msra.mxu0 0
    %554 = vmatprep.subr.bf16.mxu0 0
    %555 = vmatpush2.bf16.msra.mxu0 0
    %556 = vmatprep.subr.bf16.mxu0 0
    %557 = vmatpush2.bf16.msra.mxu0 0
    %558 = vmatprep.subr.bf16.mxu0 0
    %559 = vmatpush2.bf16.msra.mxu0 0
    %560 = vmatprep.mubr.bf16.mxu0 0
    %561 = vmatmul.mubr.bf16.gmra.mxu0 %v456
    %v562 = vpop.f32.mrf.mxu0
    %v563 = vadd.f32 %v478, %v562
    %v564 = vpop.f32.mrf.mxu0
    %v565 = vpop.f32.mrf.mxu0
    %v566 = vadd.f32 %v478, %v565
    %v567 = vpop.f32.mrf.mxu0
    %568 = vdwg.mxu0
    %v569 = vlaneseq
    %v570 = vand.u32 %v569, 127
    %vm571 = vcmp.ge.s32.totalorder %v570, 4
    %v572 = vmax.f32 %v563, -20.0
    %v573 = vmax.f32 %v566, -20.0
    %v574 = vmin.f32 %v572, 2.0
    %v575 = vmin.f32 %v573, 2.0
    %v576 = vsel %vm571, %v574, %v563
    %v577 = vsel %vm571, %v575, %v566
    %vm578 = vcmask 64512
    %579 = vst.msk [vmem:[#allocation5] sm:$0xff] %vm578, %v576
    %580 = vst.msk [vmem:[#allocation5 + $0x8] sm:$0xff] %vm578, %v577
    // Predicated region
    $region34: #{tpu_custom_call.1} parent=1 // pred_check
      _
    $region35: #{tpu_custom_call.1} parent=1 // pred_check_branch
      %582 = sbr.rel (0) target = $region37
    $region36: #{tpu_custom_call.1} parent=1 // pred_region
      %s584 = ssub.s32 256, 32
      %585 = vsyncadd [#allocation4], %s584
      %s586 = sshll.u32 [#allocation5], 4
      %s587 = int_to_ptr.vmem [resolvable:$true] %s586
      %592 = dma.vmem_to_hbm [thread:$0]  %s587, 32, %s7, [#allocation4], 32, 32, 2
    $region37: #{tpu_custom_call.1} parent=1 // pred_fallthru
      _
    // Predicated region
    $region38: #{tpu_custom_call.1} parent=1 // pred_check
      _
    $region39: #{tpu_custom_call.1} parent=1 // pred_check_branch
      %594 = sbr.rel (0) target = $region41
    $region40: #{tpu_custom_call.1} parent=1 // pred_region
      %595 = dma.done [#allocation4], 256
    $region41: #{tpu_custom_call.1} parent=1 // pred_fallthru
      _
    %596 = vsyncpa [#allocation3], 1
    %597 = vsyncpa [#allocation4], 1

</llo_original>
